<compile_context>
chip_gen: v6e
topology: v6e:2x2x1
jax: 0.10.0
libtpu: 0.0.40
codegen_flags: <defaults>
</compile_context>

<pallas_src>
import jax
import jax.numpy as jnp
from jax.experimental import pallas as pl
from jax.experimental.pallas import tpu as pltpu

BN_EPS = 1e-5


# ---------------------------------------------------------------------------
# Kernel body
# ---------------------------------------------------------------------------
def _non_local_kernel(x_ref, pcat_ref, pbias_ref, out_ref):
    # x_ref:    (Bt, C, N) in the input's native dtype.
    # pcat_ref: (C, 5) f32 -- columns: [w_g, w_theta, w_phi, w_eff, b_eff].
    # pbias_ref:(3,)  f32 in SMEM -- [b_g, b_theta, b_phi].
    x32 = x_ref[...].astype(jnp.float32)                  # widen in-register (VMEM holds native dtype)

    wg = pcat_ref[:, 0:1]                                  # (C, 1)
    wth = pcat_ref[:, 1:2]
    wph = pcat_ref[:, 2:3]
    weff = pcat_ref[:, 3:4]
    beff = pcat_ref[:, 4:5]

    # 1x1 convs (C -> 1): per-channel scale (VPU) + cross-sublane reduce (XLU).
    # VALU (~6 ops/elem) and vld (<=4/elem) are both well under the HBM roofline here,
    # so the three reductions sharing x vregs is not the binding slot.
    g = jnp.sum(x32 * wg, axis=1) + pbias_ref[0]           # (Bt, N)
    th = jnp.sum(x32 * wth, axis=1) + pbias_ref[1]         # (Bt, N)
    ph = jnp.sum(x32 * wph, axis=1) + pbias_ref[2]         # (Bt, N)

    # (f / N) @ g^T collapses to a per-batch scalar since inter_channels == 1.
    # N is the true (un-padded) logical extent, so the lane reduction is exact -- no mask.
    n = x32.shape[-1]
    s = jnp.sum(ph * g, axis=-1, keepdims=True) * (1.0 / n)   # (Bt, 1)

    y = th * s                                              # (Bt, N)

    # W conv (1 -> C) with eval-mode BatchNorm folded in: broadcast FMA + residual add.
    w_y = weff * y[:, None, :] + beff                       # (Bt, C, N)
    out_ref[...] = (w_y + x32).astype(out_ref.dtype)


# ---------------------------------------------------------------------------
# Hardware-aware sizing helpers
# ---------------------------------------------------------------------------
def _hw_budget():
    """Best-effort (vmem_capacity_bytes, tensorcores_per_chip).  Safe fallbacks."""
    vmem_cap = None
    cores = 0
    try:
        info = pltpu.get_tpu_info()
        v = getattr(info, "vmem_capacity_bytes", None)
        if isinstance(v, int) and v > 0:
            vmem_cap = v
        for name in ("num_cores", "num_tensorcores", "tensor_core_count", "core_count"):
            c = getattr(info, name, None)
            if isinstance(c, int) and c > 0:
                cores = c
                break
    except Exception:
        pass
    if cores == 0:
        try:
            cores = 2 if "v7" in jax.devices()[0].device_kind.lower() else 1
        except Exception:
            cores = 1
    if vmem_cap is None:
        vmem_cap = 64 << 20          # conservative (v7x per-TC physical VMEM)
    return vmem_cap, cores


def _choose_batch_tile(B, per_batch_bytes, target_bytes, num_cores):
    """Largest divisor of B whose block stays ~target_bytes; on multi-TC chips keep >= num_cores
    grid steps so the 'parallel' batch axis can shard across TensorCores."""
    cap = max(1, target_bytes // max(per_batch_bytes, 1))
    if num_cores > 1 and B >= num_cores:
        cap = min(cap, max(1, B // num_cores))
    bt = 1
    for d in range(1, min(cap, B) + 1):
        if B % d == 0:
            bt = d
    return bt


# ---------------------------------------------------------------------------
# Wrapper
# ---------------------------------------------------------------------------
def non_local(x, params):
    """x: (B, C, H, W). params: (wg(1,C), bg(1,), wth, bth, wph, bph,
    wW(C,1), bW(C,), gamma(C,), beta(C,), mean(C,), var(C,)).  Returns z, same shape/dtype."""
    (wg, bg, wth, bth, wph, bph, wW, bW, gamma, beta, mean, var) = params
    B, C, H, W = x.shape
    D = wg.shape[0]
    assert D == 1, "Non_local always has inter_channels == 1"
    N = H * W

    # Metadata-only reshape; x stays in its native dtype (no extra HBM pass).
    x_flat = x.reshape(B, C, N)
    itemsize = x.dtype.itemsize

    # Fold eval-mode BatchNorm into the W conv (done once, outside the kernel), and pack all
    # per-channel parameter vectors into a single (C, 5) array -> one DMA per grid step.
    inv_std = jax.lax.rsqrt(var.astype(jnp.float32) + BN_EPS)
    w_eff = wW[:, 0].astype(jnp.float32) * gamma * inv_std
    b_eff = (bW.astype(jnp.float32) - mean) * gamma * inv_std + beta
    pcat = jnp.stack(
        [wg[0].astype(jnp.float32), wth[0].astype(jnp.float32), wph[0].astype(jnp.float32),
         w_eff, b_eff],
        axis=1,
    )                                                            # (C, 5) f32
    pbias = jnp.stack([bg[0], bth[0], bph[0]]).astype(jnp.float32)   # (3,) SMEM scalars

    # Block sizing: target ~4-8 MiB per block (measured streaming kernels hit 85%+ of the HBM
    # roofline there); only force >= 2 grid steps when the chip actually has >1 TensorCore.
    vmem_cap, num_cores = _hw_budget()
    target_bytes = max(4 << 20, min(8 << 20, vmem_cap // 16))
    per_batch_bytes = C * N * itemsize
    Bt = _choose_batch_tile(B, per_batch_bytes, target_bytes, num_cores)
    grid = (B // Bt,)
    # TODO(synk): for per-batch blocks that exceed the VMEM budget even at Bt=1 (very large C*N),
    # add an 'arbitrary' C-tile grid axis that accumulates g/theta/phi into a (Bt, N) scratch and
    # runs the W/residual epilogue as a second pass over x (~1.5x traffic instead of VMEM OOM).

    block_bytes = Bt * per_batch_bytes
    param_bytes = pcat.size * 4 + 64
    # 2x in + 2x out double-buffers, plus slack for f32-widened temporaries inside the body.
    needed = 4 * block_bytes + 2 * (Bt * C * N * 4) + 2 * param_bytes + (2 << 20)
    vmem_limit = int(min(max(needed, 16 << 20), max(16 << 20, vmem_cap - (8 << 20))))

    cost = pl.CostEstimate(
        flops=int(9 * B * C * N),
        transcendentals=0,
        bytes_accessed=int(2 * B * C * N * itemsize + pcat.size * 4 + 3 * 4),
    )

    out = pl.pallas_call(
        _non_local_kernel,
        out_shape=jax.ShapeDtypeStruct((B, C, N), x.dtype),
        grid=grid,
        in_specs=[
            pl.BlockSpec((Bt, C, N), lambda b: (b, 0, 0)),        # x (full C, N trailing dims)
            pl.BlockSpec((C, 5), lambda b: (0, 0)),               # packed per-channel params
            pl.BlockSpec(memory_space=pltpu.MemorySpace.SMEM),    # projection biases (scalars)
        ],
        out_specs=pl.BlockSpec((Bt, C, N), lambda b: (b, 0, 0)),
        compiler_params=pltpu.CompilerParams(
            dimension_semantics=("parallel",),
            vmem_limit_bytes=vmem_limit,
        ),
        cost_estimate=cost,
    )(x_flat, pcat, pbias)

    return out.reshape(B, C, H, W)


# ---------------------------------------------------------------------------
# Pure-JAX reference (mirrors the PyTorch forward, eval-mode BN)
# ---------------------------------------------------------------------------
def non_local_reference(x, params):
    (wg, bg, wth, bth, wph, bph, wW, bW, gamma, beta, mean, var) = params
    B, C, H, W = x.shape
    N = H * W
    xf = x.reshape(B, C, N).astype(jnp.float32)
    g_x = jnp.einsum("dc,bcn->bdn", wg, xf) + bg[None, :, None]      # (B, 1, N)
    th = jnp.einsum("dc,bcn->bdn", wth, xf) + bth[None, :, None]
    ph = jnp.einsum("dc,bcn->bdn", wph, xf) + bph[None, :, None]
    f = jnp.einsum("bdn,bdm->bnm", th, ph) / N                       # (B, N, N)
    y = jnp.einsum("bnm,bdm->bdn", f, g_x)                           # (B, 1, N)
    w_y = jnp.einsum("cd,bdn->bcn", wW, y) + bW[None, :, None]       # (B, C, N)
    inv = jax.lax.rsqrt(var + BN_EPS)
    w_y = (w_y - mean[None, :, None]) * inv[None, :, None] * gamma[None, :, None] \
          + beta[None, :, None]
    return (w_y + xf).reshape(B, C, H, W)


def _make_params(key, C, D=1):
    ks = jax.random.split(key, 12)
    wg = 0.3 * jax.random.normal(ks[0], (D, C), jnp.float32)
    bg = 0.3 * jax.random.normal(ks[1], (D,), jnp.float32)
    wth = 0.3 * jax.random.normal(ks[2], (D, C), jnp.float32)
    bth = 0.3 * jax.random.normal(ks[3], (D,), jnp.float32)
    wph = 0.3 * jax.random.normal(ks[4], (D, C), jnp.float32)
    bph = 0.3 * jax.random.normal(ks[5], (D,), jnp.float32)
    wW = 0.3 * jax.random.normal(ks[6], (C, D), jnp.float32)
    bW = 0.3 * jax.random.normal(ks[7], (C,), jnp.float32)
    # The module initializes BN weight/bias to 0 (W_y == 0 at init); use non-trivial BN params
    # here so the W/BN branch arithmetic is actually exercised.
    gamma = 1.0 + 0.2 * jax.random.normal(ks[8], (C,), jnp.float32)
    beta = 0.1 * jax.random.normal(ks[9], (C,), jnp.float32)
    mean = 0.2 * jax.random.normal(ks[10], (C,), jnp.float32)
    var = 1.0 + jnp.abs(0.5 * jax.random.normal(ks[11], (C,), jnp.float32))
    return (wg, bg, wth, bth, wph, bph, wW, bW, gamma, beta, mean, var)


if __name__ == "__main__":
    key = jax.random.PRNGKey(0)
    k_x1, k_p1, k_x2, k_p2, k_x3, k_p3 = jax.random.split(key, 6)

    # Case 1: canonical small shape (N = 256, multiple of 128), f32.
    B, C, H, W = 2, 4, 16, 16
    x1 = jax.random.normal(k_x1, (B, C, H, W), jnp.float32)
    p1 = _make_params(k_p1, C)
    z1 = jax.block_until_ready(non_local(x1, p1))
    z1_ref = non_local_reference(x1, p1)
    assert z1.shape == x1.shape and z1.dtype == x1.dtype
    assert jnp.allclose(z1, z1_ref, atol=1e-3, rtol=1e-3), "case 1 mismatch vs. reference"

    # Case 2: lane-tail path (N = 225, not a multiple of 128 -> masked tail stores, no padding).
    B2, C2, H2, W2 = 2, 8, 15, 15
    x2 = jax.random.normal(k_x2, (B2, C2, H2, W2), jnp.float32)
    p2 = _make_params(k_p2, C2)
    z2 = jax.block_until_ready(non_local(x2, p2))
    z2_ref = non_local_reference(x2, p2)
    assert z2.shape == x2.shape and z2.dtype == x2.dtype
    assert jnp.allclose(z2, z2_ref, atol=1e-3, rtol=1e-3), "case 2 mismatch vs. reference"

    # Case 3: native-dtype streaming path (bf16 in / bf16 out, f32 math inside the kernel).
    B3, C3, H3, W3 = 2, 8, 16, 16
    x3 = jax.random.normal(k_x3, (B3, C3, H3, W3), jnp.float32).astype(jnp.bfloat16)
    p3 = _make_params(k_p3, C3)
    z3 = jax.block_until_ready(non_local(x3, p3))
    assert z3.shape == x3.shape and z3.dtype == jnp.bfloat16
    z3_ref = non_local_reference(x3.astype(jnp.float32), p3)
    assert jnp.allclose(z3.astype(jnp.float32), z3_ref, atol=3e-2, rtol=3e-2), \
        "case 3 mismatch vs. reference"

    print("KERNEL_OK")
</pallas_src>

<mosaic_0001>
module attributes {stable_mosaic.version = 11 : i64} {
  func.func @_non_local_kernel(%arg0: i32, %arg1: memref<2x4x256xf32, #tpu.memory_space<vmem>>, %arg2: memref<4x5xf32, #tpu.memory_space<vmem>>, %arg3: memref<3xf32, #tpu.memory_space<smem>>, %arg4: memref<2x4x256xf32, #tpu.memory_space<vmem>>) attributes {dimension_semantics = [#tpu.dimension_semantics<parallel>], iteration_bounds = array<i64: 1>, scalar_prefetch = 0 : i64, scratch_operands = 0 : i64, tpu.core_type = #tpu.core_type<tc>, window_params = [{transform_indices = @transform_0, window_bounds = array<i64: 2, 4, 256>}, {pipeline_mode = #tpu.pipeline_mode<synchronous>, transform_indices = @transform_1, window_bounds = array<i64: 4, 5>}, {transform_indices = @transform_2, window_bounds = array<i64: 3>}, {transform_indices = @transform_3, window_bounds = array<i64: 2, 4, 256>}]} {
    %c0 = arith.constant 0 : index
    %c0_0 = arith.constant 0 : index
    %c0_1 = arith.constant 0 : index
    %0 = vector.load %arg1[%c0, %c0_0, %c0_1] : memref<2x4x256xf32, #tpu.memory_space<vmem>>, vector<2x4x256xf32>
    %c0_2 = arith.constant 0 : index
    %c0_3 = arith.constant 0 : index
    %1 = vector.load %arg2[%c0_2, %c0_3] : memref<4x5xf32, #tpu.memory_space<vmem>>, vector<4x1xf32>
    %c0_4 = arith.constant 0 : index
    %c1 = arith.constant 1 : index
    %2 = vector.load %arg2[%c0_4, %c1] : memref<4x5xf32, #tpu.memory_space<vmem>>, vector<4x1xf32>
    %c0_5 = arith.constant 0 : index
    %c2 = arith.constant 2 : index
    %3 = vector.load %arg2[%c0_5, %c2] : memref<4x5xf32, #tpu.memory_space<vmem>>, vector<4x1xf32>
    %c0_6 = arith.constant 0 : index
    %c3 = arith.constant 3 : index
    %4 = vector.load %arg2[%c0_6, %c3] : memref<4x5xf32, #tpu.memory_space<vmem>>, vector<4x1xf32>
    %c0_7 = arith.constant 0 : index
    %c4 = arith.constant 4 : index
    %5 = vector.load %arg2[%c0_7, %c4] : memref<4x5xf32, #tpu.memory_space<vmem>>, vector<4x1xf32>
    %6 = vector.shape_cast %1 : vector<4x1xf32> to vector<1x4x1xf32>
    %7 = vector.broadcast %6 : vector<1x4x1xf32> to vector<2x4x256xf32>
    %8 = arith.mulf %0, %7 : vector<2x4x256xf32>
    %cst = arith.constant dense<0.000000e+00> : vector<2x256xf32>
    %9 = vector.multi_reduction <add>, %8, %cst [1] : vector<2x4x256xf32> to vector<2x256xf32>
    %c0_8 = arith.constant 0 : index
    %10 = memref.load %arg3[%c0_8] : memref<3xf32, #tpu.memory_space<smem>>
    %11 = vector.broadcast %10 : f32 to vector<2x256xf32>
    %12 = arith.addf %9, %11 : vector<2x256xf32>
    %13 = vector.shape_cast %2 : vector<4x1xf32> to vector<1x4x1xf32>
    %14 = vector.broadcast %13 : vector<1x4x1xf32> to vector<2x4x256xf32>
    %15 = arith.mulf %0, %14 : vector<2x4x256xf32>
    %cst_9 = arith.constant dense<0.000000e+00> : vector<2x256xf32>
    %16 = vector.multi_reduction <add>, %15, %cst_9 [1] : vector<2x4x256xf32> to vector<2x256xf32>
    %c1_10 = arith.constant 1 : index
    %17 = memref.load %arg3[%c1_10] : memref<3xf32, #tpu.memory_space<smem>>
    %18 = vector.broadcast %17 : f32 to vector<2x256xf32>
    %19 = arith.addf %16, %18 : vector<2x256xf32>
    %20 = vector.shape_cast %3 : vector<4x1xf32> to vector<1x4x1xf32>
    %21 = vector.broadcast %20 : vector<1x4x1xf32> to vector<2x4x256xf32>
    %22 = arith.mulf %0, %21 : vector<2x4x256xf32>
    %cst_11 = arith.constant dense<0.000000e+00> : vector<2x256xf32>
    %23 = vector.multi_reduction <add>, %22, %cst_11 [1] : vector<2x4x256xf32> to vector<2x256xf32>
    %c2_12 = arith.constant 2 : index
    %24 = memref.load %arg3[%c2_12] : memref<3xf32, #tpu.memory_space<smem>>
    %25 = vector.broadcast %24 : f32 to vector<2x256xf32>
    %26 = arith.addf %23, %25 : vector<2x256xf32>
    %27 = arith.mulf %26, %12 : vector<2x256xf32>
    %cst_13 = arith.constant dense<0.000000e+00> : vector<2xf32>
    %28 = vector.multi_reduction <add>, %27, %cst_13 [1] : vector<2x256xf32> to vector<2xf32>
    %29 = vector.shape_cast %28 : vector<2xf32> to vector<2x1xf32>
    %cst_14 = arith.constant 3.906250e-03 : f32
    %30 = vector.broadcast %cst_14 : f32 to vector<2x1xf32>
    %31 = arith.mulf %29, %30 : vector<2x1xf32>
    %32 = vector.broadcast %31 : vector<2x1xf32> to vector<2x256xf32>
    %33 = arith.mulf %19, %32 : vector<2x256xf32>
    %34 = vector.shape_cast %33 : vector<2x256xf32> to vector<2x1x256xf32>
    %35 = vector.shape_cast %4 : vector<4x1xf32> to vector<1x4x1xf32>
    %36 = vector.broadcast %35 : vector<1x4x1xf32> to vector<2x4x256xf32>
    %37 = vector.broadcast %34 : vector<2x1x256xf32> to vector<2x4x256xf32>
    %38 = arith.mulf %36, %37 : vector<2x4x256xf32>
    %39 = vector.shape_cast %5 : vector<4x1xf32> to vector<1x4x1xf32>
    %40 = vector.broadcast %39 : vector<1x4x1xf32> to vector<2x4x256xf32>
    %41 = arith.addf %38, %40 : vector<2x4x256xf32>
    %42 = arith.addf %41, %0 : vector<2x4x256xf32>
    %c0_15 = arith.constant 0 : index
    %c0_16 = arith.constant 0 : index
    %c0_17 = arith.constant 0 : index
    %43 = vector.load %arg4[%c0_15, %c0_16, %c0_17] : memref<2x4x256xf32, #tpu.memory_space<vmem>>, vector<2x4x256xf32>
    tpu.vector_store %arg4[%c0_15, %c0_16, %c0_17], %42 {strides = array<i32>} : memref<2x4x256xf32, #tpu.memory_space<vmem>>, vector<2x4x256xf32>,
    return
  }
  func.func @transform_0(%arg0: i32) -> (i32, i32, i32) {
    %c0_i32 = arith.constant 0 : i32
    %c0_i32_0 = arith.constant 0 : i32
    %c0_i32_1 = arith.constant 0 : i32
    return %arg0, %c0_i32, %c0_i32_0 : i32, i32, i32
  }
  func.func @transform_1(%arg0: i32) -> (i32, i32) {
    %c0_i32 = arith.constant 0 : i32
    %c0_i32_0 = arith.constant 0 : i32
    %c0_i32_1 = arith.constant 0 : i32
    return %c0_i32, %c0_i32_0 : i32, i32
  }
  func.func @transform_2(%arg0: i32) -> i32 {
    %c0_i32 = arith.constant 0 : i32
    %c0_i32_0 = arith.constant 0 : i32
    return %c0_i32 : i32
  }
  func.func @transform_3(%arg0: i32) -> (i32, i32, i32) {
    %c0_i32 = arith.constant 0 : i32
    %c0_i32_0 = arith.constant 0 : i32
    %c0_i32_1 = arith.constant 0 : i32
    return %arg0, %c0_i32, %c0_i32_0 : i32, i32, i32
  }
}

</mosaic_0001>

<llo_original>
// kernel: tpu_custom_call.1
$region0: #{tpu_custom_call.1}
  #allocation0 [shape = 'u32[]', space=smem, size = 0x4, offset = 0x4, fixed_abs, tag = 'smem constant byte address 0x4 - core index']
  #allocation1 [shape = 'u32[144,128]{1,0:T(1,128)}', space=vmem, size = 0x12000, scoped, tag = 'internal scratch']
  %s0 = inlined_call_operand.hbm [shape: f32[2,4,256], index: 0, kind: input, shape index: {}]
  %s1 = inlined_call_operand.hbm [shape: f32[4,5], index: 1, kind: input, shape index: {}]
  %s2 = inlined_call_operand.vmem [shape: f32[3], index: 2, kind: input, shape index: {}]
  %s3 = inlined_call_operand.hbm [shape: f32[2,4,256], index: 3, kind: output, shape index: {}]
  %s4 = sld [smem:[#allocation0]]
  $region34: #{tpu_custom_call.1} parent=0
    _
  %s6 = ssub.s32 1, %s4
  %s7 = scalar_select 0, %s6, %s4
  $region1: #{tpu_custom_call.1} parent=0
    #allocation2 [shape = 'u8[8192]{0}', space=vmem, size = 0x2000, scoped, tag = 'input window, operand 0, single buffered']
    #allocation3 [shape = 's32[1]{0}', space=sflag, size = 0x4, scoped, tag = 'scoped memory for tpu_custom_call.1']
    #allocation4 [shape = 's32[1]{0}', space=sflag, size = 0x4, scoped, tag = 'scoped memory for tpu_custom_call.1']
    #allocation5 [shape = 's32[1]{0}', space=sflag, size = 0x4, scoped, tag = 'scoped memory for tpu_custom_call.1']
    #allocation6 [shape = 'u8[2048]{0}', space=vmem, size = 0x800, scoped, tag = 'input window, operand 1, single buffered']
    #allocation7 [shape = 's32[1]{0}', space=sflag, size = 0x4, scoped, tag = 'scoped memory for tpu_custom_call.1']
    #allocation8 [shape = 'u8[512]{0}', space=smem, size = 0x200, scoped, tag = 'input window, operand 2, single buffered']
    #allocation9 [shape = 'u8[8192]{0}', space=vmem, size = 0x2000, scoped, tag = 'output window, operand 0, single buffered']
    %8 = vsyncpa [#allocation3], 0
    %9 = vsyncpa [#allocation7], 0
    %10 = vsyncpa [#allocation5], 0
    %11 = vsyncpa [#allocation4], 0
    // Predicated region
    $region2: #{tpu_custom_call.1} parent=1 // pred_check
      _
    $region3: #{tpu_custom_call.1} parent=1 // pred_check_branch
      %13 = sbr.rel (0) target = $region5
    $region4: #{tpu_custom_call.1} parent=1 // pred_region
      %s15 = ssub.s32 256, 256
      %16 = vsyncadd [#allocation3], %s15
      %s17 = sshll.u32 [#allocation2], 4
      %s18 = int_to_ptr.vmem [resolvable:$true] %s17
      %23 = dma.hbm_to_vmem [thread:$0]  %s0, 256, %s18, [#allocation3], 128, 128, 8
    $region5: #{tpu_custom_call.1} parent=1 // pred_fallthru
      _
    // Predicated region
    $region6: #{tpu_custom_call.1} parent=1 // pred_check
      _
    $region7: #{tpu_custom_call.1} parent=1 // pred_check_branch
      %25 = sbr.rel (0) target = $region9
    $region8: #{tpu_custom_call.1} parent=1 // pred_region
      %s27 = ssub.s32 64, 64
      %28 = vsyncadd [#allocation7], %s27
      %s30 = sshll.u32 [#allocation6], 4
      %s31 = int_to_ptr.vmem [resolvable:$true] %s30
      %33 = dma.hbm_to_vmem [thread:$0]  %s1, 64, %s31, [#allocation7]
    $region9: #{tpu_custom_call.1} parent=1 // pred_fallthru
      _
    // Predicated region
    $region10: #{tpu_custom_call.1} parent=1 // pred_check
      _
    $region11: #{tpu_custom_call.1} parent=1 // pred_check_branch
      %35 = sbr.rel (0) target = $region13
    $region12: #{tpu_custom_call.1} parent=1 // pred_region
      %s37 = ssub.s32 16, 16
      %38 = vsyncadd [#allocation5], %s37
      %s40 = sshll.u32 %s2, 4
      %s41 = int_to_ptr.vmem [resolvable:$true] %s40
      %43 = dma.vmem_to_smem %s41, 16, [#allocation8], [#allocation5]
    $region13: #{tpu_custom_call.1} parent=1 // pred_fallthru
      _
    // Predicated region
    $region14: #{tpu_custom_call.1} parent=1 // pred_check
      _
    $region15: #{tpu_custom_call.1} parent=1 // pred_check_branch
      %45 = sbr.rel (0) target = $region17
    $region16: #{tpu_custom_call.1} parent=1 // pred_region
      %46 = dma.done [#allocation3], 256
    $region17: #{tpu_custom_call.1} parent=1 // pred_fallthru
      _
    // Predicated region
    $region18: #{tpu_custom_call.1} parent=1 // pred_check
      _
    $region19: #{tpu_custom_call.1} parent=1 // pred_check_branch
      %48 = sbr.rel (0) target = $region21
    $region20: #{tpu_custom_call.1} parent=1 // pred_region
      %49 = dma.done [#allocation7], 64
    $region21: #{tpu_custom_call.1} parent=1 // pred_fallthru
      _
    // Predicated region
    $region22: #{tpu_custom_call.1} parent=1 // pred_check
      _
    $region23: #{tpu_custom_call.1} parent=1 // pred_check_branch
      %51 = sbr.rel (0) target = $region25
    $region24: #{tpu_custom_call.1} parent=1 // pred_region
      %52 = dma.done [#allocation5], 16
    $region25: #{tpu_custom_call.1} parent=1 // pred_fallthru
      _
    %53 = sfence
    %v54 = vld [vmem:[#allocation2] sm:$0xff]
    %v55 = vld [vmem:[#allocation2 + $0x8] sm:$0xff]
    %v56 = vld [vmem:[#allocation6] sm:$0xf]
    %58 = vset.pattern.permute.xlu0 0
    %59 = vperm.xlu0 %58, %v56
    %v60 = vpop.permute.xlu0 %59
    %v62 = vunpack.c.l.s4 839922192
    %v63 = vunpack.c.0.s8 %v62
    %v64 = vlaneseq
    %v65 = vshrl.u32 %v64, 7
    %v66 = vsub.s32 %v63, %v65
    %v67 = vrot.slane %v60, %v66
    %v69 = vmul.f32 %v54, %v67
    %v70 = vmul.f32 %v55, %v67
    %v73 = vcombine.high %v69, %v69
    %v74 = vcombine.high %v70, %v70
    %vm77 = vcmask 1043456
    %v78 = vsel %vm77, %v69, 0.0
    %v79 = vrot.slane %v78, 4
    %v80 = vadd.f32 %v78, %v79
    %v81 = vrot.slane %v80, 2
    %v82 = vadd.f32 %v80, %v81
    %v83 = vrot.slane %v82, 1
    %v84 = vadd.f32 %v82, %v83
    %v85 = vsel %vm77, %v73, 0.0
    %v86 = vrot.slane %v85, 4
    %v87 = vadd.f32 %v85, %v86
    %v88 = vrot.slane %v87, 2
    %v89 = vadd.f32 %v87, %v88
    %v90 = vrot.slane %v89, 1
    %v91 = vadd.f32 %v89, %v90
    %v92 = vsel %vm77, %v70, 0.0
    %v93 = vrot.slane %v92, 4
    %v94 = vadd.f32 %v92, %v93
    %v95 = vrot.slane %v94, 2
    %v96 = vadd.f32 %v94, %v95
    %v97 = vrot.slane %v96, 1
    %v98 = vadd.f32 %v96, %v97
    %v99 = vsel %vm77, %v74, 0.0
    %v100 = vrot.slane %v99, 4
    %v101 = vadd.f32 %v99, %v100
    %v102 = vrot.slane %v101, 2
    %v103 = vadd.f32 %v101, %v102
    %v104 = vrot.slane %v103, 1
    %v105 = vadd.f32 %v103, %v104
    %s106 = sld [smem:[#allocation8]]
    %v107 = vstv %s106
    %v108 = vadd.f32 %v84, %v107
    %v109 = vadd.f32 %v91, %v107
    %v110 = vadd.f32 %v98, %v107
    %v111 = vadd.f32 %v105, %v107
    %112 = vset.pattern.permute.xlu0 1
    %113 = vperm.xlu0 %112, %v56
    %v114 = vpop.permute.xlu0 %113
    %v116 = vunpack.c.l.s4 839922192
    %v117 = vunpack.c.0.s8 %v116
    %v118 = vlaneseq
    %v119 = vshrl.u32 %v118, 7
    %v120 = vsub.s32 %v117, %v119
    %v121 = vrot.slane %v114, %v120
    %v123 = vmul.f32 %v54, %v121
    %v124 = vmul.f32 %v55, %v121
    %v127 = vcombine.high %v123, %v123
    %v128 = vcombine.high %v124, %v124
    %v131 = vsel %vm77, %v123, 0.0
    %v132 = vrot.slane %v131, 4
    %v133 = vadd.f32 %v131, %v132
    %v134 = vrot.slane %v133, 2
    %v135 = vadd.f32 %v133, %v134
    %v136 = vrot.slane %v135, 1
    %v137 = vadd.f32 %v135, %v136
    %v138 = vsel %vm77, %v127, 0.0
    %v139 = vrot.slane %v138, 4
    %v140 = vadd.f32 %v138, %v139
    %v141 = vrot.slane %v140, 2
    %v142 = vadd.f32 %v140, %v141
    %v143 = vrot.slane %v142, 1
    %v144 = vadd.f32 %v142, %v143
    %v145 = vsel %vm77, %v124, 0.0
    %v146 = vrot.slane %v145, 4
    %v147 = vadd.f32 %v145, %v146
    %v148 = vrot.slane %v147, 2
    %v149 = vadd.f32 %v147, %v148
    %v150 = vrot.slane %v149, 1
    %v151 = vadd.f32 %v149, %v150
    %v152 = vsel %vm77, %v128, 0.0
    %v153 = vrot.slane %v152, 4
    %v154 = vadd.f32 %v152, %v153
    %v155 = vrot.slane %v154, 2
    %v156 = vadd.f32 %v154, %v155
    %v157 = vrot.slane %v156, 1
    %v158 = vadd.f32 %v156, %v157
    %s159 = sld [smem:[#allocation8 + $0x1]]
    %v160 = vstv %s159
    %v161 = vadd.f32 %v137, %v160
    %v162 = vadd.f32 %v144, %v160
    %v163 = vadd.f32 %v151, %v160
    %v164 = vadd.f32 %v158, %v160
    %165 = vset.pattern.permute.xlu0 2
    %166 = vperm.xlu0 %165, %v56
    %v167 = vpop.permute.xlu0 %166
    %v169 = vunpack.c.l.s4 839922192
    %v170 = vunpack.c.0.s8 %v169
    %v171 = vlaneseq
    %v172 = vshrl.u32 %v171, 7
    %v173 = vsub.s32 %v170, %v172
    %v174 = vrot.slane %v167, %v173
    %v176 = vmul.f32 %v54, %v174
    %v177 = vmul.f32 %v55, %v174
    %v180 = vcombine.high %v176, %v176
    %v181 = vcombine.high %v177, %v177
    %v184 = vsel %vm77, %v176, 0.0
    %v185 = vrot.slane %v184, 4
    %v186 = vadd.f32 %v184, %v185
    %v187 = vrot.slane %v186, 2
    %v188 = vadd.f32 %v186, %v187
    %v189 = vrot.slane %v188, 1
    %v190 = vadd.f32 %v188, %v189
    %v191 = vsel %vm77, %v180, 0.0
    %v192 = vrot.slane %v191, 4
    %v193 = vadd.f32 %v191, %v192
    %v194 = vrot.slane %v193, 2
    %v195 = vadd.f32 %v193, %v194
    %v196 = vrot.slane %v195, 1
    %v197 = vadd.f32 %v195, %v196
    %v198 = vsel %vm77, %v177, 0.0
    %v199 = vrot.slane %v198, 4
    %v200 = vadd.f32 %v198, %v199
    %v201 = vrot.slane %v200, 2
    %v202 = vadd.f32 %v200, %v201
    %v203 = vrot.slane %v202, 1
    %v204 = vadd.f32 %v202, %v203
    %v205 = vsel %vm77, %v181, 0.0
    %v206 = vrot.slane %v205, 4
    %v207 = vadd.f32 %v205, %v206
    %v208 = vrot.slane %v207, 2
    %v209 = vadd.f32 %v207, %v208
    %v210 = vrot.slane %v209, 1
    %v211 = vadd.f32 %v209, %v210
    %s212 = sld [smem:[#allocation8 + $0x2]]
    %v213 = vstv %s212
    %v214 = vadd.f32 %v190, %v213
    %v215 = vadd.f32 %v197, %v213
    %v216 = vadd.f32 %v204, %v213
    %v217 = vadd.f32 %v211, %v213
    %v218 = vmul.f32 %v214, %v108
    %v219 = vmul.f32 %v215, %v109
    %v220 = vmul.f32 %v216, %v110
    %v221 = vmul.f32 %v217, %v111
    %vm226 = vcmask 1041409
    %v227 = vsel %vm226, %v220, %v218
    %v228 = vsel %vm226, %v221, %v219
    %vm231 = vcmask 1041408
    %v232 = vsel %vm231, %v227, 0.0
    %v233 = vsel %vm231, %v228, 0.0
    %v234 = vadd.f32 %v232, %v233
    %235 = vadd.xlane.f32.xlu0 %v234
    %v236 = vpop.xlane.xlu0 %235
    %v237 = vmul.f32 %v236, 0.00390625
    %v239 = vrot.slane %v237, 1
    %v242 = vmul.f32 %v161, %v237
    %v243 = vmul.f32 %v162, %v237
    %v244 = vmul.f32 %v163, %v239
    %v245 = vmul.f32 %v164, %v239
    %246 = vset.pattern.permute.xlu0 3
    %247 = vperm.xlu0 %246, %v56
    %v248 = vpop.permute.xlu0 %247
    %v250 = vlaneseq
    %v251 = vshrl.u32 %v250, 7
    %v252 = vsub.s32 0, %v251
    %v253 = vrot.slane %v242, %v252
    %v254 = vlaneseq
    %v255 = vshrl.u32 %v254, 7
    %v256 = vsub.s32 0, %v255
    %v257 = vrot.slane %v243, %v256
    %v258 = vlaneseq
    %v259 = vshrl.u32 %v258, 7
    %v260 = vsub.s32 0, %v259
    %v261 = vrot.slane %v244, %v260
    %v262 = vlaneseq
    %v263 = vshrl.u32 %v262, 7
    %v264 = vsub.s32 0, %v263
    %v265 = vrot.slane %v245, %v264
    %v266 = vmul.f32 %v248, %v253
    %v267 = vmul.f32 %v248, %v257
    %v268 = vmul.f32 %v248, %v261
    %v269 = vmul.f32 %v248, %v265
    %270 = vset.pattern.permute.xlu0 4
    %271 = vperm.xlu0 %270, %v56
    %v272 = vpop.permute.xlu0 %271
    %v274 = vadd.f32 %v266, %v272
    %v275 = vadd.f32 %v267, %v272
    %v276 = vadd.f32 %v268, %v272
    %v277 = vadd.f32 %v269, %v272
    %v280 = vcombine.high %v54, %v54
    %v281 = vcombine.high %v55, %v55
    %v284 = vadd.f32 %v274, %v54
    %v285 = vadd.f32 %v275, %v280
    %v286 = vadd.f32 %v276, %v55
    %v287 = vadd.f32 %v277, %v281
    %v292 = vcombine.low %v284, %v285
    %v293 = vcombine.low %v286, %v287
    %296 = vst [vmem:[#allocation9] sm:$0xff] %v292
    %297 = vst [vmem:[#allocation9 + $0x8] sm:$0xff] %v293
    // Predicated region
    $region26: #{tpu_custom_call.1} parent=1 // pred_check
      _
    $region27: #{tpu_custom_call.1} parent=1 // pred_check_branch
      %299 = sbr.rel (0) target = $region29
    $region28: #{tpu_custom_call.1} parent=1 // pred_region
      %s301 = ssub.s32 256, 256
      %302 = vsyncadd [#allocation4], %s301
      %s303 = sshll.u32 [#allocation9], 4
      %s304 = int_to_ptr.vmem [resolvable:$true] %s303
      %309 = dma.vmem_to_hbm [thread:$0]  %s304, 256, %s3, [#allocation4], 128, 128, 8
    $region29: #{tpu_custom_call.1} parent=1 // pred_fallthru
      _
    // Predicated region
    $region30: #{tpu_custom_call.1} parent=1 // pred_check
      _
    $region31: #{tpu_custom_call.1} parent=1 // pred_check_branch
      %311 = sbr.rel (0) target = $region33
    $region32: #{tpu_custom_call.1} parent=1 // pred_region
      %312 = dma.done [#allocation4], 256
    $region33: #{tpu_custom_call.1} parent=1 // pred_fallthru
      _
    %313 = vsyncpa [#allocation3], 1
    %314 = vsyncpa [#allocation7], 1
    %315 = vsyncpa [#allocation4], 1
    %316 = vsyncpa [#allocation5], 1

</llo_original>
